<compile_context>
chip_gen: v5e
topology: v5e:2x2
jax: 0.10.0
libtpu: 0.0.40
codegen_flags: <defaults>
</compile_context>

<pallas_src>
import jax
import jax.numpy as jnp
from jax.experimental import pallas as pl
from jax.experimental.pallas import tpu as pltpu


def _round_up(x: int, m: int) -> int:
    return (x + m - 1) // m * m


# ----------------------------------------------------------------------------- kernel

def make_decoder_kernel(n_hidden: int):
    """Kernel for one batch tile.

    Ref order: latent, (w_l, b_l) * n_hidden, head_w, head_bias_and_mask, out.
    head_bias_and_mask rows: [fused head bias ; 0/1 sigmoid-column mask].
    BN (eval) is already folded into the weights/biases; Dropout == identity.
    """

    def kernel(*refs):
        latent_ref = refs[0]
        h = latent_ref[...]                                   # f32 [Bt, L_pad]
        idx = 1
        for _ in range(n_hidden):
            w_ref = refs[idx]                                 # bf16 [in_pad, hd_pad]
            b_ref = refs[idx + 1]                             # f32  [1, hd_pad]
            idx += 2
            h = jnp.dot(h.astype(jnp.bfloat16), w_ref[...],
                        preferred_element_type=jnp.float32) + b_ref[...]
            h = jnp.maximum(h, 0.0)                           # ReLU (BN folded downstream)

        wh_ref = refs[idx]       # bf16 [H_pad, N_pad] = [static | temporal | mask | time | 0]
        bm_ref = refs[idx + 1]   # f32  [2, N_pad]: row0 = bias, row1 = sigmoid-column mask
        out_ref = refs[idx + 2]

        # NOTE: the PyTorch temporal_attention ends in Softmax(dim=1) over shape [B, 1],
        # which is identically 1.0, so hidden*attention == hidden exactly -> branch removed.
        bm = bm_ref[...]
        lin = jnp.dot(h.astype(jnp.bfloat16), wh_ref[...],
                      preferred_element_type=jnp.float32) + bm[0:1, :]
        sig_mask = bm[1:2, :]
        out_ref[...] = lin + sig_mask * (jax.nn.sigmoid(lin) - lin)

    return kernel


# ----------------------------------------------------------------------------- params

def init_params(key, latent_dim, static_dim, temporal_dim, hidden_dims):
    """Deterministic synthetic parameters. Weights are [in, out]; biases [1, out]."""
    p = {}
    ks = iter(jax.random.split(key, 64))

    def lin(in_d, out_d):
        w = jax.random.normal(next(ks), (in_d, out_d), jnp.float32) * (1.0 / jnp.sqrt(in_d))
        b = jax.random.normal(next(ks), (1, out_d), jnp.float32) * 0.05
        return w, b

    p["hidden"] = []
    in_d = latent_dim
    for hd in hidden_dims:
        w, b = lin(in_d, hd)
        gamma = 1.0 + 0.1 * jax.random.normal(next(ks), (1, hd), jnp.float32)
        beta = 0.1 * jax.random.normal(next(ks), (1, hd), jnp.float32)
        run_mean = jnp.zeros((1, hd), jnp.float32)
        run_var = jnp.ones((1, hd), jnp.float32)
        eps = 1e-5
        scale = gamma / jnp.sqrt(run_var + eps)        # eval-mode BN fold
        shift = beta - run_mean * scale
        p["hidden"].append((w, b, scale, shift))
        in_d = hd

    H = hidden_dims[-1]
    p["w_static"], p["b_static"] = lin(H, static_dim)
    p["w_temp"], p["b_temp"] = lin(H, temporal_dim)
    p["w_mask"], p["b_mask"] = lin(H, temporal_dim)
    p["w_time"], p["b_time"] = lin(H, 1)
    # Attention params kept only for the reference (branch is mathematically a no-op).
    p["w_att1"], p["b_att1"] = lin(H, temporal_dim)
    p["w_att2"], p["b_att2"] = lin(temporal_dim, 1)
    return p


def pack_params(params, latent_dim, static_dim, temporal_dim):
    """Pad/fuse/fold params for the kernel (done once; exact wrt the unpadded f32 math,
    up to the bf16 weight cast)."""
    # Attention-branch elimination is only valid while the final projection width is 1.
    assert params["w_att2"].shape[1] == 1, "temporal_attention final width must be 1"

    def rcpad(x, rows, cols):
        return jnp.pad(x, ((0, rows - x.shape[0]), (0, cols - x.shape[1])))

    L_pad = _round_up(latent_dim, 128)

    packed = {"layers": [], "latent_pad": L_pad}
    in_pad = L_pad
    prev_sc, prev_sh = None, None
    for (w, b, sc, sh) in params["hidden"]:
        hd = w.shape[1]
        hd_pad = _round_up(hd, 128)
        if prev_sc is not None:
            # Fold the PREVIOUS layer's BN:  (z*sc + sh) @ W + b == z @ (diag(sc) W) + (sh W + b)
            b = b + prev_sh @ w
            w = w * prev_sc.reshape(-1, 1)
        w_p = rcpad(w, in_pad, hd_pad).astype(jnp.bfloat16)     # [in_pad, hd_pad] bf16
        b_p = rcpad(b, 1, hd_pad)                                # [1, hd_pad]   f32
        packed["layers"].append((w_p, b_p))
        prev_sc, prev_sh = sc, sh
        in_pad = hd_pad

    # Fused output heads: columns = [static | temporal | mask | time], padded to 128 lanes.
    n_total = static_dim + 2 * temporal_dim + 1
    n_pad = _round_up(n_total, 128)
    wh = jnp.concatenate([params["w_static"], params["w_temp"],
                          params["w_mask"], params["w_time"]], axis=1)   # [H, n_total]
    bh = jnp.concatenate([params["b_static"], params["b_temp"],
                          params["b_mask"], params["b_time"]], axis=1)   # [1, n_total]
    # Fold the LAST hidden layer's BN into the heads.
    bh = bh + prev_sh @ wh
    wh = wh * prev_sc.reshape(-1, 1)

    packed["head_w"] = rcpad(wh, in_pad, n_pad).astype(jnp.bfloat16)     # [H_pad, n_pad] bf16
    bh_p = rcpad(bh, 1, n_pad)                                           # [1, n_pad]
    mask_lo = static_dim + temporal_dim
    mask_hi = mask_lo + temporal_dim
    col = jnp.arange(n_pad)
    sig_mask = ((col >= mask_lo) & (col < mask_hi)).astype(jnp.float32).reshape(1, n_pad)
    packed["head_bm"] = jnp.concatenate([bh_p, sig_mask], axis=0)        # [2, n_pad] f32
    return packed


# ----------------------------------------------------------------------------- wrapper

def _pick_block_b(batch: int) -> int:
    """Batch tile: floor 8 for tiny batches; otherwise >=2 grid steps (v7x megacore),
    tiles capped at 256 rows to bound VMEM on v7x (64 MiB) while filling the MXU."""
    b8 = _round_up(batch, 8)
    if b8 <= 8:
        return 8
    if b8 <= 16:
        return 8                       # 2 steps -> both v7x TensorCores
    return min(256, _round_up((b8 + 1) // 2, 8))


def _resident_spec(shape):
    """Constant-index (resident) input; request single-buffering to halve VMEM."""
    nd = len(shape)
    idx_map = lambda i: (0,) * nd
    try:
        return pl.BlockSpec(shape, idx_map, pipeline_mode=pl.Buffered(1))
    except (TypeError, AttributeError):
        return pl.BlockSpec(shape, idx_map)


def decoder_forward(latent, packed, seq_length, static_dim, temporal_dim, *, block_b=None):
    B, L = latent.shape
    L_pad = packed["latent_pad"]
    if block_b is None:
        block_b = _pick_block_b(B)
    B_pad = _round_up(B, block_b)
    latent = jnp.pad(latent, ((0, B_pad - B), (0, L_pad - L)))
    n_pad = packed["head_w"].shape[1]

    args = [latent]
    in_specs = [pl.BlockSpec((block_b, L_pad), lambda i: (i, 0))]
    for (w_p, b_p) in packed["layers"]:
        args += [w_p, b_p]
        in_specs += [_resident_spec(w_p.shape), _resident_spec(b_p.shape)]
    args += [packed["head_w"], packed["head_bm"]]
    in_specs += [_resident_spec(packed["head_w"].shape),
                 _resident_spec(packed["head_bm"].shape)]

    # VMEM budget: resident weights (x2 in case single-buffering is unavailable) +
    # double-buffered activation/output tiles + intermediates, with headroom;
    # clamped to 64 MiB so it also fits v7x physical VMEM.
    weight_bytes = sum(int(a.size) * a.dtype.itemsize for a in args[1:])
    hid_cols = sum(w.shape[1] for (w, _) in packed["layers"])
    act_bytes = 4 * block_b * (2 * (L_pad + n_pad) + 2 * hid_cols)
    vmem_limit = int(min(max(2 * weight_bytes + act_bytes + (4 << 20), 16 << 20), 64 << 20))

    kernel = make_decoder_kernel(len(packed["layers"]))
    heads = pl.pallas_call(
        kernel,
        out_shape=jax.ShapeDtypeStruct((B_pad, n_pad), jnp.float32),
        grid_spec=pltpu.PrefetchScalarGridSpec(
            num_scalar_prefetch=0,
            grid=(B_pad // block_b,),
            in_specs=in_specs,
            out_specs=pl.BlockSpec((block_b, n_pad), lambda i: (i, 0)),
        ),
        compiler_params=pltpu.CompilerParams(
            dimension_semantics=("parallel",),
            vmem_limit_bytes=vmem_limit,
        ),
    )(*args)

    # Slice the lane-dense head slab and broadcast over seq_length in the wrapper
    # (the per-timestep compute is t-independent in eval mode -> exact).
    heads = heads[:B]
    s, t = static_dim, temporal_dim
    static_out = heads[:, :s]
    temp_t = heads[:, s:s + t]
    mask_t = heads[:, s + t:s + 2 * t]
    time_out = heads[:, s + 2 * t:s + 2 * t + 1]
    temporal = jnp.broadcast_to(temp_t[:, None, :], (B, seq_length, t))
    mask = jnp.broadcast_to(mask_t[:, None, :], (B, seq_length, t))
    return static_out, temporal, mask, time_out


# ----------------------------------------------------------------------------- reference

def decoder_reference(latent, params, seq_length):
    """Pure-JAX f32 reference mirroring the PyTorch forward (eval mode), incl. the
    attention branch (whose softmax over a size-1 axis is identically 1)."""
    h = latent
    for (w, b, sc, sh) in params["hidden"]:
        h = jnp.maximum(h @ w + b, 0.0) * sc + sh
    static_out = h @ params["w_static"] + params["b_static"]
    time_out = h @ params["w_time"] + params["b_time"]
    a = jnp.tanh(h @ params["w_att1"] + params["b_att1"])
    logits = a @ params["w_att2"] + params["b_att2"]          # [B, 1]
    att = jax.nn.softmax(logits, axis=1)                      # == 1.0 everywhere
    hh = h * att
    temp_t = hh @ params["w_temp"] + params["b_temp"]
    mask_t = jax.nn.sigmoid(hh @ params["w_mask"] + params["b_mask"])
    temporal = jnp.broadcast_to(temp_t[:, None, :],
                                (latent.shape[0], seq_length, temp_t.shape[-1]))
    mask = jnp.broadcast_to(mask_t[:, None, :], temporal.shape)
    return static_out, temporal, mask, time_out


# ----------------------------------------------------------------------------- main

if __name__ == "__main__":
    batch = 4
    latent_dim = 32
    static_dim = 8
    temporal_dim = 16
    hidden_dims = [64, 32]
    seq_length = 8

    key = jax.random.PRNGKey(0)
    k_param, k_latent = jax.random.split(key)
    params = init_params(k_param, latent_dim, static_dim, temporal_dim, hidden_dims)
    packed = pack_params(params, latent_dim, static_dim, temporal_dim)
    latent = jax.random.normal(k_latent, (batch, latent_dim), jnp.float32)

    outs = decoder_forward(latent, packed, seq_length, static_dim, temporal_dim)
    outs = jax.block_until_ready(outs)

    refs = decoder_reference(latent, params, seq_length)
    for o, r in zip(outs, refs):
        assert o.shape == r.shape and o.dtype == r.dtype
        # bf16 weights/activations in the kernel -> relaxed tolerance vs the f32 reference.
        assert jnp.allclose(o, r, atol=5e-2, rtol=5e-2), "mismatch vs reference"

    print("KERNEL_OK")
</pallas_src>

<mosaic_0001>
module attributes {stable_mosaic.version = 11 : i64} {
  func.func @kernel(%arg0: i32, %arg1: memref<8x128xf32, #tpu.memory_space<vmem>>, %arg2: memref<128x128xbf16, #tpu.memory_space<vmem>>, %arg3: memref<1x128xf32, #tpu.memory_space<vmem>>, %arg4: memref<128x128xbf16, #tpu.memory_space<vmem>>, %arg5: memref<1x128xf32, #tpu.memory_space<vmem>>, %arg6: memref<128x128xbf16, #tpu.memory_space<vmem>>, %arg7: memref<2x128xf32, #tpu.memory_space<vmem>>, %arg8: memref<8x128xf32, #tpu.memory_space<vmem>>) attributes {dimension_semantics = [#tpu.dimension_semantics<parallel>], iteration_bounds = array<i64: 1>, scalar_prefetch = 0 : i64, scratch_operands = 0 : i64, tpu.core_type = #tpu.core_type<tc>, window_params = [{transform_indices = @transform_0, window_bounds = array<i64: 8, 128>}, {pipeline_mode = #tpu.pipeline_mode<synchronous>, transform_indices = @transform_1, window_bounds = array<i64: 128, 128>}, {pipeline_mode = #tpu.pipeline_mode<synchronous>, transform_indices = @transform_2, window_bounds = array<i64: 1, 128>}, {pipeline_mode = #tpu.pipeline_mode<synchronous>, transform_indices = @transform_3, window_bounds = array<i64: 128, 128>}, {pipeline_mode = #tpu.pipeline_mode<synchronous>, transform_indices = @transform_4, window_bounds = array<i64: 1, 128>}, {pipeline_mode = #tpu.pipeline_mode<synchronous>, transform_indices = @transform_5, window_bounds = array<i64: 128, 128>}, {pipeline_mode = #tpu.pipeline_mode<synchronous>, transform_indices = @transform_6, window_bounds = array<i64: 2, 128>}, {transform_indices = @transform_7, window_bounds = array<i64: 8, 128>}]} {
    %c0 = arith.constant 0 : index
    %c0_0 = arith.constant 0 : index
    %0 = vector.load %arg1[%c0, %c0_0] : memref<8x128xf32, #tpu.memory_space<vmem>>, vector<8x128xf32>
    %1 = arith.truncf %0 : vector<8x128xf32> to vector<8x128xbf16>
    %c0_1 = arith.constant 0 : index
    %c0_2 = arith.constant 0 : index
    %2 = vector.load %arg2[%c0_1, %c0_2] : memref<128x128xbf16, #tpu.memory_space<vmem>>, vector<128x128xbf16>
    %cst = arith.constant dense<0.000000e+00> : vector<8x128xf32>
    %3 = tpu.matmul %1, %2, %cst {dimension_numbers = #tpu.dot_dimension_numbers<[1], [0], [0], [1], [0, 0, 1, 1], [], []>} : vector<8x128xbf16>, vector<128x128xbf16>, vector<8x128xf32> -> vector<8x128xf32>
    %c0_3 = arith.constant 0 : index
    %c0_4 = arith.constant 0 : index
    %4 = vector.load %arg3[%c0_3, %c0_4] : memref<1x128xf32, #tpu.memory_space<vmem>>, vector<1x128xf32>
    %5 = vector.broadcast %4 : vector<1x128xf32> to vector<8x128xf32>
    %6 = arith.addf %3, %5 : vector<8x128xf32>
    %cst_5 = arith.constant 0.000000e+00 : f32
    %7 = vector.broadcast %cst_5 : f32 to vector<8x128xf32>
    %8 = arith.maximumf %6, %7 : vector<8x128xf32>
    %9 = arith.truncf %8 : vector<8x128xf32> to vector<8x128xbf16>
    %c0_6 = arith.constant 0 : index
    %c0_7 = arith.constant 0 : index
    %10 = vector.load %arg4[%c0_6, %c0_7] : memref<128x128xbf16, #tpu.memory_space<vmem>>, vector<128x128xbf16>
    %cst_8 = arith.constant dense<0.000000e+00> : vector<8x128xf32>
    %11 = tpu.matmul %9, %10, %cst_8 {dimension_numbers = #tpu.dot_dimension_numbers<[1], [0], [0], [1], [0, 0, 1, 1], [], []>} : vector<8x128xbf16>, vector<128x128xbf16>, vector<8x128xf32> -> vector<8x128xf32>
    %c0_9 = arith.constant 0 : index
    %c0_10 = arith.constant 0 : index
    %12 = vector.load %arg5[%c0_9, %c0_10] : memref<1x128xf32, #tpu.memory_space<vmem>>, vector<1x128xf32>
    %13 = vector.broadcast %12 : vector<1x128xf32> to vector<8x128xf32>
    %14 = arith.addf %11, %13 : vector<8x128xf32>
    %cst_11 = arith.constant 0.000000e+00 : f32
    %15 = vector.broadcast %cst_11 : f32 to vector<8x128xf32>
    %16 = arith.maximumf %14, %15 : vector<8x128xf32>
    %c0_12 = arith.constant 0 : index
    %c0_13 = arith.constant 0 : index
    %17 = vector.load %arg7[%c0_12, %c0_13] : memref<2x128xf32, #tpu.memory_space<vmem>>, vector<2x128xf32>
    %18 = arith.truncf %16 : vector<8x128xf32> to vector<8x128xbf16>
    %c0_14 = arith.constant 0 : index
    %c0_15 = arith.constant 0 : index
    %19 = vector.load %arg6[%c0_14, %c0_15] : memref<128x128xbf16, #tpu.memory_space<vmem>>, vector<128x128xbf16>
    %cst_16 = arith.constant dense<0.000000e+00> : vector<8x128xf32>
    %20 = tpu.matmul %18, %19, %cst_16 {dimension_numbers = #tpu.dot_dimension_numbers<[1], [0], [0], [1], [0, 0, 1, 1], [], []>} : vector<8x128xbf16>, vector<128x128xbf16>, vector<8x128xf32> -> vector<8x128xf32>
    %21 = vector.extract_strided_slice %17 {offsets = [0, 0], sizes = [1, 128], strides = [1, 1]} : vector<2x128xf32> to vector<1x128xf32>
    %22 = vector.broadcast %21 : vector<1x128xf32> to vector<8x128xf32>
    %23 = arith.addf %20, %22 : vector<8x128xf32>
    %24 = vector.extract_strided_slice %17 {offsets = [1, 0], sizes = [1, 128], strides = [1, 1]} : vector<2x128xf32> to vector<1x128xf32>
    %25 = arith.negf %23 : vector<8x128xf32>
    %26 = math.exp %25 : vector<8x128xf32>
    %cst_17 = arith.constant 1.000000e+00 : f32
    %27 = vector.broadcast %cst_17 : f32 to vector<8x128xf32>
    %28 = arith.addf %27, %26 : vector<8x128xf32>
    %29 = arith.divf %27, %28 : vector<8x128xf32>
    %30 = arith.subf %29, %23 : vector<8x128xf32>
    %31 = vector.broadcast %24 : vector<1x128xf32> to vector<8x128xf32>
    %32 = arith.mulf %31, %30 : vector<8x128xf32>
    %33 = arith.addf %23, %32 : vector<8x128xf32>
    %c0_18 = arith.constant 0 : index
    %c0_19 = arith.constant 0 : index
    %34 = vector.load %arg8[%c0_18, %c0_19] : memref<8x128xf32, #tpu.memory_space<vmem>>, vector<8x128xf32>
    tpu.vector_store %arg8[%c0_18, %c0_19], %33 {strides = array<i32>} : memref<8x128xf32, #tpu.memory_space<vmem>>, vector<8x128xf32>,
    return
  }
  func.func @transform_0(%arg0: i32) -> (i32, i32) {
    %c0_i32 = arith.constant 0 : i32
    %c0_i32_0 = arith.constant 0 : i32
    return %arg0, %c0_i32 : i32, i32
  }
  func.func @transform_1(%arg0: i32) -> (i32, i32) {
    %c0_i32 = arith.constant 0 : i32
    %c0_i32_0 = arith.constant 0 : i32
    %c0_i32_1 = arith.constant 0 : i32
    return %c0_i32, %c0_i32_0 : i32, i32
  }
  func.func @transform_2(%arg0: i32) -> (i32, i32) {
    %c0_i32 = arith.constant 0 : i32
    %c0_i32_0 = arith.constant 0 : i32
    %c0_i32_1 = arith.constant 0 : i32
    return %c0_i32, %c0_i32_0 : i32, i32
  }
  func.func @transform_3(%arg0: i32) -> (i32, i32) {
    %c0_i32 = arith.constant 0 : i32
    %c0_i32_0 = arith.constant 0 : i32
    %c0_i32_1 = arith.constant 0 : i32
    return %c0_i32, %c0_i32_0 : i32, i32
  }
  func.func @transform_4(%arg0: i32) -> (i32, i32) {
    %c0_i32 = arith.constant 0 : i32
    %c0_i32_0 = arith.constant 0 : i32
    %c0_i32_1 = arith.constant 0 : i32
    return %c0_i32, %c0_i32_0 : i32, i32
  }
  func.func @transform_5(%arg0: i32) -> (i32, i32) {
    %c0_i32 = arith.constant 0 : i32
    %c0_i32_0 = arith.constant 0 : i32
    %c0_i32_1 = arith.constant 0 : i32
    return %c0_i32, %c0_i32_0 : i32, i32
  }
  func.func @transform_6(%arg0: i32) -> (i32, i32) {
    %c0_i32 = arith.constant 0 : i32
    %c0_i32_0 = arith.constant 0 : i32
    %c0_i32_1 = arith.constant 0 : i32
    return %c0_i32, %c0_i32_0 : i32, i32
  }
  func.func @transform_7(%arg0: i32) -> (i32, i32) {
    %c0_i32 = arith.constant 0 : i32
    %c0_i32_0 = arith.constant 0 : i32
    return %arg0, %c0_i32 : i32, i32
  }
}

</mosaic_0001>

<llo_original>
// kernel: tpu_custom_call.1
$region0: #{tpu_custom_call.1}
  #allocation0 [shape = 'u32[]', space=smem, size = 0x4, offset = 0x4, fixed_abs, tag = 'smem constant byte address 0x4 - core index']
  #allocation1 [shape = 'u32[72,128]{1,0:T(1,128)}', space=vmem, size = 0x9000, scoped, tag = 'internal scratch']
  %s0 = inlined_call_operand.hbm [shape: f32[8,128], index: 0, kind: input, shape index: {}]
  %s1 = inlined_call_operand.hbm [shape: bf16[128,128], index: 1, kind: input, shape index: {}]
  %s2 = inlined_call_operand.vmem [shape: f32[1,128], index: 2, kind: input, shape index: {}]
  %s3 = inlined_call_operand.hbm [shape: bf16[128,128], index: 3, kind: input, shape index: {}]
  %s4 = inlined_call_operand.hbm [shape: f32[1,128], index: 4, kind: input, shape index: {}]
  %s5 = inlined_call_operand.hbm [shape: bf16[128,128], index: 5, kind: input, shape index: {}]
  %s6 = inlined_call_operand.vmem [shape: f32[2,128], index: 6, kind: input, shape index: {}]
  %s7 = inlined_call_operand.hbm [shape: f32[8,128], index: 7, kind: output, shape index: {}]
  %s8 = sld [smem:[#allocation0]]
  $region58: #{tpu_custom_call.1} parent=0
    _
  %s10 = ssub.s32 1, %s8
  %s11 = scalar_select 0, %s10, %s8
  $region1: #{tpu_custom_call.1} parent=0
    #allocation2 [shape = 'u8[4096]{0}', space=vmem, size = 0x1000, scoped, tag = 'input window, operand 0, single buffered']
    #allocation3 [shape = 's32[1]{0}', space=sflag, size = 0x4, scoped, tag = 'scoped memory for tpu_custom_call.1']
    #allocation4 [shape = 's32[1]{0}', space=sflag, size = 0x4, scoped, tag = 'scoped memory for tpu_custom_call.1']
    #allocation5 [shape = 'u8[32768]{0}', space=vmem, size = 0x8000, scoped, tag = 'input window, operand 1, single buffered']
    #allocation6 [shape = 's32[1]{0}', space=sflag, size = 0x4, scoped, tag = 'scoped memory for tpu_custom_call.1']
    #allocation7 [shape = 'u8[32768]{0}', space=vmem, size = 0x8000, scoped, tag = 'input window, operand 3, single buffered']
    #allocation8 [shape = 'u8[512]{0}', space=vmem, size = 0x400, scoped, tag = 'input window, operand 4, single buffered']
    #allocation9 [shape = 's32[1]{0}', space=sflag, size = 0x4, scoped, tag = 'scoped memory for tpu_custom_call.1']
    #allocation10 [shape = 'u8[32768]{0}', space=vmem, size = 0x8000, scoped, tag = 'input window, operand 5, single buffered']
    #allocation11 [shape = 'u8[4096]{0}', space=vmem, size = 0x1000, scoped, tag = 'output window, operand 0, single buffered']
    %12 = vsyncpa [#allocation3], 0
    %13 = vsyncpa [#allocation6], 0
    %14 = vsyncpa [#allocation9], 0
    %15 = vsyncpa [#allocation4], 0
    // Predicated region
    $region2: #{tpu_custom_call.1} parent=1 // pred_check
      _
    $region3: #{tpu_custom_call.1} parent=1 // pred_check_branch
      %17 = sbr.rel (0) target = $region5
    $region4: #{tpu_custom_call.1} parent=1 // pred_region
      %19 = vsyncadd [#allocation3], 0
      %s21 = sshll.u32 %s0, 4
      %s22 = int_to_ptr.hbm [resolvable:$true] %s21
      %s23 = sshll.u32 [#allocation2], 4
      %s24 = int_to_ptr.vmem [resolvable:$true] %s23
      %26 = dma.hbm_to_vmem [thread:$0]  %s22, 128, %s24, [#allocation3]
    $region5: #{tpu_custom_call.1} parent=1 // pred_fallthru
      _
    // Predicated region
    $region6: #{tpu_custom_call.1} parent=1 // pred_check
      _
    $region7: #{tpu_custom_call.1} parent=1 // pred_check_branch
      %28 = sbr.rel (0) target = $region9
    $region8: #{tpu_custom_call.1} parent=1 // pred_region
      %30 = vsyncadd [#allocation6], 0
      %s31 = sshll.u32 %s1, 4
      %s32 = int_to_ptr.hbm [resolvable:$true] %s31
      %s33 = sshll.u32 [#allocation5], 4
      %s34 = int_to_ptr.vmem [resolvable:$true] %s33
      %39 = dma.hbm_to_vmem [thread:$0]  %s32, 1024, %s34, [#allocation6], 64, 64, 4
    $region9: #{tpu_custom_call.1} parent=1 // pred_fallthru
      _
    // Predicated region
    $region10: #{tpu_custom_call.1} parent=1 // pred_check
      _
    $region11: #{tpu_custom_call.1} parent=1 // pred_check_branch
      %41 = sbr.rel (0) target = $region13
    $region12: #{tpu_custom_call.1} parent=1 // pred_region
      _
    $region13: #{tpu_custom_call.1} parent=1 // pred_fallthru
      _
    // Predicated region
    $region14: #{tpu_custom_call.1} parent=1 // pred_check
      _
    $region15: #{tpu_custom_call.1} parent=1 // pred_check_branch
      %43 = sbr.rel (0) target = $region17
    $region16: #{tpu_custom_call.1} parent=1 // pred_region
      %45 = vsyncadd [#allocation6], 0
      %s46 = sshll.u32 %s3, 4
      %s47 = int_to_ptr.hbm [resolvable:$true] %s46
      %s48 = sshll.u32 [#allocation7], 4
      %s49 = int_to_ptr.vmem [resolvable:$true] %s48
      %54 = dma.hbm_to_vmem [thread:$0]  %s47, 1024, %s49, [#allocation6], 64, 64, 4
    $region17: #{tpu_custom_call.1} parent=1 // pred_fallthru
      _
    // Predicated region
    $region18: #{tpu_custom_call.1} parent=1 // pred_check
      _
    $region19: #{tpu_custom_call.1} parent=1 // pred_check_branch
      %56 = sbr.rel (0) target = $region21
    $region20: #{tpu_custom_call.1} parent=1 // pred_region
      %58 = vsyncadd [#allocation9], 0
      %s60 = sshll.u32 %s4, 4
      %s61 = int_to_ptr.hbm [resolvable:$true] %s60
      %s62 = sshll.u32 [#allocation8], 4
      %s63 = int_to_ptr.vmem [resolvable:$true] %s62
      %65 = dma.hbm_to_vmem [thread:$0]  %s61, 16, %s63, [#allocation9]
    $region21: #{tpu_custom_call.1} parent=1 // pred_fallthru
      _
    // Predicated region
    $region22: #{tpu_custom_call.1} parent=1 // pred_check
      _
    $region23: #{tpu_custom_call.1} parent=1 // pred_check_branch
      %67 = sbr.rel (0) target = $region25
    $region24: #{tpu_custom_call.1} parent=1 // pred_region
      %69 = vsyncadd [#allocation9], 0
      %s70 = sshll.u32 %s5, 4
      %s71 = int_to_ptr.hbm [resolvable:$true] %s70
      %s72 = sshll.u32 [#allocation10], 4
      %s73 = int_to_ptr.vmem [resolvable:$true] %s72
      %78 = dma.hbm_to_vmem [thread:$0]  %s71, 1024, %s73, [#allocation9], 64, 64, 4
    $region25: #{tpu_custom_call.1} parent=1 // pred_fallthru
      _
    // Predicated region
    $region26: #{tpu_custom_call.1} parent=1 // pred_check
      _
    $region27: #{tpu_custom_call.1} parent=1 // pred_check_branch
      %80 = sbr.rel (0) target = $region29
    $region28: #{tpu_custom_call.1} parent=1 // pred_region
      _
    $region29: #{tpu_custom_call.1} parent=1 // pred_fallthru
      _
    // Predicated region
    $region30: #{tpu_custom_call.1} parent=1 // pred_check
      _
    $region31: #{tpu_custom_call.1} parent=1 // pred_check_branch
      %82 = sbr.rel (0) target = $region33
    $region32: #{tpu_custom_call.1} parent=1 // pred_region
      %84 = dma.done [#allocation3], 128
    $region33: #{tpu_custom_call.1} parent=1 // pred_fallthru
      _
    // Predicated region
    $region34: #{tpu_custom_call.1} parent=1 // pred_check
      _
    $region35: #{tpu_custom_call.1} parent=1 // pred_check_branch
      %86 = sbr.rel (0) target = $region37
    $region36: #{tpu_custom_call.1} parent=1 // pred_region
      %88 = dma.done [#allocation6], 1024
    $region37: #{tpu_custom_call.1} parent=1 // pred_fallthru
      _
    // Predicated region
    $region38: #{tpu_custom_call.1} parent=1 // pred_check
      _
    $region39: #{tpu_custom_call.1} parent=1 // pred_check_branch
      %90 = sbr.rel (0) target = $region41
    $region40: #{tpu_custom_call.1} parent=1 // pred_region
      %92 = dma.done [#allocation6], 1024
    $region41: #{tpu_custom_call.1} parent=1 // pred_fallthru
      _
    // Predicated region
    $region42: #{tpu_custom_call.1} parent=1 // pred_check
      _
    $region43: #{tpu_custom_call.1} parent=1 // pred_check_branch
      %94 = sbr.rel (0) target = $region45
    $region44: #{tpu_custom_call.1} parent=1 // pred_region
      %96 = dma.done [#allocation9], 16
    $region45: #{tpu_custom_call.1} parent=1 // pred_fallthru
      _
    // Predicated region
    $region46: #{tpu_custom_call.1} parent=1 // pred_check
      _
    $region47: #{tpu_custom_call.1} parent=1 // pred_check_branch
      %98 = sbr.rel (0) target = $region49
    $region48: #{tpu_custom_call.1} parent=1 // pred_region
      %100 = dma.done [#allocation9], 1024
    $region49: #{tpu_custom_call.1} parent=1 // pred_fallthru
      _
    %v101 = vld [vmem:[#allocation2] sm:$0xff]
    %v102 = vpack.c.bf16 %v101, %v101
    %v103 = vld [vmem:[#allocation5] sm:$0xf]
    %v104 = vld [vmem:[#allocation5 + $0x4] sm:$0xf]
    %v105 = vld [vmem:[#allocation5 + $0x8] sm:$0xf]
    %v106 = vld [vmem:[#allocation5 + $0xc] sm:$0xf]
    %v107 = vld [vmem:[#allocation5 + $0x10] sm:$0xf]
    %v108 = vld [vmem:[#allocation5 + $0x14] sm:$0xf]
    %v109 = vld [vmem:[#allocation5 + $0x18] sm:$0xf]
    %v110 = vld [vmem:[#allocation5 + $0x1c] sm:$0xf]
    %v111 = vld [vmem:[#allocation5 + $0x20] sm:$0xf]
    %v112 = vld [vmem:[#allocation5 + $0x24] sm:$0xf]
    %v113 = vld [vmem:[#allocation5 + $0x28] sm:$0xf]
    %v114 = vld [vmem:[#allocation5 + $0x2c] sm:$0xf]
    %v115 = vld [vmem:[#allocation5 + $0x30] sm:$0xf]
    %v116 = vld [vmem:[#allocation5 + $0x34] sm:$0xf]
    %v117 = vld [vmem:[#allocation5 + $0x38] sm:$0xf]
    %v118 = vld [vmem:[#allocation5 + $0x3c] sm:$0xf]
    %v119 = vld [vmem:[%s2] sm:$0x1]
    %v121 = vperm.slane %v119, 0
    %v139 = vunpack.c.l.b16 %v103
    %v140 = vunpack.c.l.b16 %v104
    %v141 = vunpack.c.l.b16 %v105
    %v142 = vunpack.c.l.b16 %v106
    %v143 = vunpack.c.l.b16 %v107
    %v144 = vunpack.c.l.b16 %v108
    %v145 = vunpack.c.l.b16 %v109
    %v146 = vunpack.c.l.b16 %v110
    %v147 = vunpack.c.l.b16 %v111
    %v148 = vunpack.c.l.b16 %v112
    %v149 = vunpack.c.l.b16 %v113
    %v150 = vunpack.c.l.b16 %v114
    %v151 = vunpack.c.l.b16 %v115
    %v152 = vunpack.c.l.b16 %v116
    %v153 = vunpack.c.l.b16 %v117
    %v154 = vunpack.c.l.b16 %v118
    %v155 = vpack.c.b16 %v140, %v139
    %v156 = vpack.c.b16 %v142, %v141
    %v157 = vpack.c.b16 %v144, %v143
    %v158 = vpack.c.b16 %v146, %v145
    %v159 = vpack.c.b16 %v148, %v147
    %v160 = vpack.c.b16 %v150, %v149
    %v161 = vpack.c.b16 %v152, %v151
    %v162 = vpack.c.b16 %v154, %v153
    %171 = vmatpush.bf16.msra.mxu0 %v162
    %172 = vmatpush.bf16.msra.mxu0 %v161
    %173 = vmatpush.bf16.msra.mxu0 %v160
    %174 = vmatpush.bf16.msra.mxu0 %v159
    %175 = vmatpush.bf16.msra.mxu0 %v158
    %176 = vmatpush.bf16.msra.mxu0 %v157
    %177 = vmatpush.bf16.msra.mxu0 %v156
    %178 = vmatpush.bf16.msra.mxu0 %v155
    %179 = vmatmul.bf16.gmra.mxu0 %v102
    %v180 = vpop.f32.mrf.mxu0
    %v181 = vadd.f32 %v121, %v180
    %v182 = vpop.f32.mrf.mxu0
    %183 = vdwg.mxu0
    %v184 = vmax.f32 %v181, 0.0
    %v185 = vpack.c.bf16 %v184, %v184
    %v186 = vld [vmem:[#allocation7] sm:$0xf]
    %v187 = vld [vmem:[#allocation7 + $0x4] sm:$0xf]
    %v188 = vld [vmem:[#allocation7 + $0x8] sm:$0xf]
    %v189 = vld [vmem:[#allocation7 + $0xc] sm:$0xf]
    %v190 = vld [vmem:[#allocation7 + $0x10] sm:$0xf]
    %v191 = vld [vmem:[#allocation7 + $0x14] sm:$0xf]
    %v192 = vld [vmem:[#allocation7 + $0x18] sm:$0xf]
    %v193 = vld [vmem:[#allocation7 + $0x1c] sm:$0xf]
    %v194 = vld [vmem:[#allocation7 + $0x20] sm:$0xf]
    %v195 = vld [vmem:[#allocation7 + $0x24] sm:$0xf]
    %v196 = vld [vmem:[#allocation7 + $0x28] sm:$0xf]
    %v197 = vld [vmem:[#allocation7 + $0x2c] sm:$0xf]
    %v198 = vld [vmem:[#allocation7 + $0x30] sm:$0xf]
    %v199 = vld [vmem:[#allocation7 + $0x34] sm:$0xf]
    %v200 = vld [vmem:[#allocation7 + $0x38] sm:$0xf]
    %v201 = vld [vmem:[#allocation7 + $0x3c] sm:$0xf]
    %v202 = vld [vmem:[#allocation8] sm:$0x1]
    %v204 = vperm.slane %v202, 0
    %v222 = vunpack.c.l.b16 %v186
    %v223 = vunpack.c.l.b16 %v187
    %v224 = vunpack.c.l.b16 %v188
    %v225 = vunpack.c.l.b16 %v189
    %v226 = vunpack.c.l.b16 %v190
    %v227 = vunpack.c.l.b16 %v191
    %v228 = vunpack.c.l.b16 %v192
    %v229 = vunpack.c.l.b16 %v193
    %v230 = vunpack.c.l.b16 %v194
    %v231 = vunpack.c.l.b16 %v195
    %v232 = vunpack.c.l.b16 %v196
    %v233 = vunpack.c.l.b16 %v197
    %v234 = vunpack.c.l.b16 %v198
    %v235 = vunpack.c.l.b16 %v199
    %v236 = vunpack.c.l.b16 %v200
    %v237 = vunpack.c.l.b16 %v201
    %v238 = vpack.c.b16 %v223, %v222
    %v239 = vpack.c.b16 %v225, %v224
    %v240 = vpack.c.b16 %v227, %v226
    %v241 = vpack.c.b16 %v229, %v228
    %v242 = vpack.c.b16 %v231, %v230
    %v243 = vpack.c.b16 %v233, %v232
    %v244 = vpack.c.b16 %v235, %v234
    %v245 = vpack.c.b16 %v237, %v236
    %254 = vmatpush.bf16.msra.mxu0 %v245
    %255 = vmatpush.bf16.msra.mxu0 %v244
    %256 = vmatpush.bf16.msra.mxu0 %v243
    %257 = vmatpush.bf16.msra.mxu0 %v242
    %258 = vmatpush.bf16.msra.mxu0 %v241
    %259 = vmatpush.bf16.msra.mxu0 %v240
    %260 = vmatpush.bf16.msra.mxu0 %v239
    %261 = vmatpush.bf16.msra.mxu0 %v238
    %262 = vmatmul.bf16.gmra.mxu0 %v185
    %v263 = vpop.f32.mrf.mxu0
    %v264 = vadd.f32 %v204, %v263
    %v265 = vpop.f32.mrf.mxu0
    %266 = vdwg.mxu0
    %v267 = vmax.f32 %v264, 0.0
    %v268 = vld [vmem:[%s6] sm:$0x3]
    %v269 = vpack.c.bf16 %v267, %v267
    %v270 = vld [vmem:[#allocation10] sm:$0xf]
    %v271 = vld [vmem:[#allocation10 + $0x4] sm:$0xf]
    %v272 = vld [vmem:[#allocation10 + $0x8] sm:$0xf]
    %v273 = vld [vmem:[#allocation10 + $0xc] sm:$0xf]
    %v274 = vld [vmem:[#allocation10 + $0x10] sm:$0xf]
    %v275 = vld [vmem:[#allocation10 + $0x14] sm:$0xf]
    %v276 = vld [vmem:[#allocation10 + $0x18] sm:$0xf]
    %v277 = vld [vmem:[#allocation10 + $0x1c] sm:$0xf]
    %v278 = vld [vmem:[#allocation10 + $0x20] sm:$0xf]
    %v279 = vld [vmem:[#allocation10 + $0x24] sm:$0xf]
    %v280 = vld [vmem:[#allocation10 + $0x28] sm:$0xf]
    %v281 = vld [vmem:[#allocation10 + $0x2c] sm:$0xf]
    %v282 = vld [vmem:[#allocation10 + $0x30] sm:$0xf]
    %v283 = vld [vmem:[#allocation10 + $0x34] sm:$0xf]
    %v284 = vld [vmem:[#allocation10 + $0x38] sm:$0xf]
    %v285 = vld [vmem:[#allocation10 + $0x3c] sm:$0xf]
    %v286 = vperm.slane %v268, 0
    %v303 = vunpack.c.l.b16 %v270
    %v304 = vunpack.c.l.b16 %v271
    %v305 = vunpack.c.l.b16 %v272
    %v306 = vunpack.c.l.b16 %v273
    %v307 = vunpack.c.l.b16 %v274
    %v308 = vunpack.c.l.b16 %v275
    %v309 = vunpack.c.l.b16 %v276
    %v310 = vunpack.c.l.b16 %v277
    %v311 = vunpack.c.l.b16 %v278
    %v312 = vunpack.c.l.b16 %v279
    %v313 = vunpack.c.l.b16 %v280
    %v314 = vunpack.c.l.b16 %v281
    %v315 = vunpack.c.l.b16 %v282
    %v316 = vunpack.c.l.b16 %v283
    %v317 = vunpack.c.l.b16 %v284
    %v318 = vunpack.c.l.b16 %v285
    %v319 = vpack.c.b16 %v304, %v303
    %v320 = vpack.c.b16 %v306, %v305
    %v321 = vpack.c.b16 %v308, %v307
    %v322 = vpack.c.b16 %v310, %v309
    %v323 = vpack.c.b16 %v312, %v311
    %v324 = vpack.c.b16 %v314, %v313
    %v325 = vpack.c.b16 %v316, %v315
    %v326 = vpack.c.b16 %v318, %v317
    %335 = vmatpush.bf16.msra.mxu0 %v326
    %336 = vmatpush.bf16.msra.mxu0 %v325
    %337 = vmatpush.bf16.msra.mxu0 %v324
    %338 = vmatpush.bf16.msra.mxu0 %v323
    %339 = vmatpush.bf16.msra.mxu0 %v322
    %340 = vmatpush.bf16.msra.mxu0 %v321
    %341 = vmatpush.bf16.msra.mxu0 %v320
    %342 = vmatpush.bf16.msra.mxu0 %v319
    %343 = vmatmul.bf16.gmra.mxu0 %v269
    %v344 = vpop.f32.mrf.mxu0
    %v345 = vadd.f32 %v286, %v344
    %v346 = vpop.f32.mrf.mxu0
    %347 = vdwg.mxu0
    %v348 = vxor.u32 %v345, 2147483648
    %v349 = vmul.f32 %v348, 1.442695
    %v350 = vpow.pop %v349
    %v351 = vadd.f32 %v350, 1.0
    %v352 = vrcp.pop %v351
    %v353 = vmul.f32 %v351, %v352
    %v354 = vsub.f32 1.0, %v353
    %v355 = vmul.f32 %v352, %v354
    %v356 = vadd.f32 %v352, %v355
    %vm357 = vweird.f32 %v351
    %vm358 = vweird.f32 %v352
    %vm359 = vmor %vm357, %vm358
    %v360 = vsel %vm359, %v352, %v356
    %v361 = vand.u32 2147483647, %v351
    %vm362 = vcmp.eq.f32.partialorder %v361, 8.507059e+37
    %v363 = vand.u32 %v351, 2147483648
    %v364 = vor.u32 1.1754944e-38, %v363
    %v365 = vsel %vm362, %v364, %v360
    %v366 = vmul.f32 1.0, %v365
    %v367 = vsub.f32 %v366, %v345
    %v368 = vperm.slane %v268, 1
    %v369 = vmul.f32 %v368, %v367
    %v370 = vadd.f32 %v345, %v369
    %371 = vst [vmem:[#allocation11] sm:$0xff] %v370
    // Predicated region
    $region50: #{tpu_custom_call.1} parent=1 // pred_check
      _
    $region51: #{tpu_custom_call.1} parent=1 // pred_check_branch
      %373 = sbr.rel (0) target = $region53
    $region52: #{tpu_custom_call.1} parent=1 // pred_region
      %375 = vsyncadd [#allocation4], 0
      %s377 = sshll.u32 [#allocation11], 4
      %s378 = int_to_ptr.vmem [resolvable:$true] %s377
      %s379 = sshll.u32 %s7, 4
      %s380 = int_to_ptr.hbm [resolvable:$true] %s379
      %382 = dma.vmem_to_hbm [thread:$0]  %s378, 128, %s380, [#allocation4]
    $region53: #{tpu_custom_call.1} parent=1 // pred_fallthru
      _
    // Predicated region
    $region54: #{tpu_custom_call.1} parent=1 // pred_check
      _
    $region55: #{tpu_custom_call.1} parent=1 // pred_check_branch
      %384 = sbr.rel (0) target = $region57
    $region56: #{tpu_custom_call.1} parent=1 // pred_region
      %386 = dma.done [#allocation4], 128
    $region57: #{tpu_custom_call.1} parent=1 // pred_fallthru
      _
    %387 = vsyncpa [#allocation3], 1
    %388 = vsyncpa [#allocation6], 1
    %389 = vsyncpa [#allocation9], 1
    %390 = vsyncpa [#allocation4], 1

</llo_original>
